<compile_context>
chip_gen: v7x
topology: tpu7x:2x2x1
jax: 0.10.0
libtpu: 0.0.40
codegen_flags: <defaults>
</compile_context>

<pallas_src>
import math
import numpy as np
import jax
import jax.numpy as jnp
from jax import lax
from jax.experimental import pallas as pl
from jax.experimental.pallas import tpu as pltpu

_EPS = 1e-12                     # matches torch.nn.functional.normalize default eps
_LANE = 128
_VREG_ELEMS = 8 * _LANE          # one f32 vreg = 1024 elements
_MAX_TILE_ELEMS = 8192           # per-plane elements per grid step
_VMEM_BUDGET = 8 * 1024 * 1024   # conservative: under v5e's 16 MiB default scoped VMEM


def _ceil_to(x, m):
    return ((x + m - 1) // m) * m


def _pick_tile_elems(e_needed):
    """Lane-flattened (b, face) elements handled per grid step (multiple of 1024)."""
    # Honest per-element VMEM cost: double-buffered pred/gt/mask/out blocks,
    # gt-normal scratch, plus headroom for elementwise temporaries (all f32).
    per_elem = 4 * (2 * 9 + 2 * 9 + 2 * 1 + 2 * 3 + 3 + 16)
    vmem_cap = max(_VREG_ELEMS,
                   (_VMEM_BUDGET // per_elem) // _VREG_ELEMS * _VREG_ELEMS)
    cap = min(_MAX_TILE_ELEMS, vmem_cap)
    # Keep >= 2 tiles on the parallel axis when the problem is big enough
    # (v7x shards the "parallel" grid axis across its 2 TensorCores).
    if e_needed > _VREG_ELEMS:
        cap = min(cap, _ceil_to((e_needed + 1) // 2, _VREG_ELEMS))
    return max(_VREG_ELEMS, min(cap, _ceil_to(e_needed, _VREG_ELEMS)))


def _seq_normal_loss_kernel(w_ref, p_ref, g_ref, m_ref, out_ref, ngt_ref):
    """Grid = (element tiles, N predictions); N (reduction) axis is last.

    w_ref   : (N,)           SMEM  pre-normalized gamma weights
    p_ref   : (9, Mt, 128)   VMEM  prediction i face-vertex planes (vertex*3 + xyz)
    g_ref   : (9, Mt, 128)   VMEM  gt face-vertex planes
    m_ref   : (Mt, 128)      VMEM  per-face valid mask (read only at i == 0)
    out_ref : (3, Mt, 128)   VMEM  accumulator (cos1, cos2, cos3), resident over N
    ngt_ref : (3, Mt, 128)   VMEM  scratch: gt face normal * mask (hoisted across N)
    """
    i = pl.program_id(1)  # prediction index (reduction axis)

    def inv_norm(x, y, z):
        s = x * x + y * y + z * z
        # 1/max(||v||, eps) == rsqrt(max(||v||^2, eps^2)); rsqrt -> EUP slot.
        return lax.rsqrt(jnp.maximum(s, _EPS * _EPS))

    # ---- GT-invariant work: once per tile (first prediction only) ----
    @pl.when(i == 0)
    def _():
        out_ref[...] = jnp.zeros_like(out_ref)
        g = [g_ref[k] for k in range(9)]              # 9 x (Mt, 128)
        e1 = [g[3 + c] - g[c] for c in range(3)]      # gt edge v1
        e2 = [g[6 + c] - g[c] for c in range(3)]      # gt edge v2
        i1 = inv_norm(*e1)
        i2 = inv_norm(*e2)
        a = [e1[c] * i1 for c in range(3)]
        b = [e2[c] * i2 for c in range(3)]
        nx = a[1] * b[2] - a[2] * b[1]
        ny = a[2] * b[0] - a[0] * b[2]
        nz = a[0] * b[1] - a[1] * b[0]
        # fold the (nonnegative) valid mask into the gt normal: |dot(e, n*m)| == |dot(e,n)|*m
        inn = inv_norm(nx, ny, nz) * m_ref[...]
        ngt_ref[0] = nx * inn
        ngt_ref[1] = ny * inn
        ngt_ref[2] = nz * inn

    # ---- per-prediction work (hot path) ----
    p = [p_ref[k] for k in range(9)]                  # 9 x (Mt, 128)
    n = [ngt_ref[c] for c in range(3)]
    w = w_ref[i]                                      # scalar weight

    e1 = [p[3 + c] - p[c] for c in range(3)]          # p1 - p0
    e2 = [p[6 + c] - p[c] for c in range(3)]          # p2 - p0
    e3 = [p[6 + c] - p[3 + c] for c in range(3)]      # p2 - p1

    def weighted_cos(e):
        d = e[0] * n[0] + e[1] * n[1] + e[2] * n[2]
        return jnp.abs(d) * inv_norm(*e) * w          # |dot| / ||e|| * mask * weight

    out_ref[0] += weighted_cos(e1)
    out_ref[1] += weighted_cos(e2)
    out_ref[2] += weighted_cos(e3)


def sequence_normal_loss(preds, gt, valid, face, gamma=0.8):
    """preds: list of (B, V, 3); gt: (B, V, 3); valid: (B, V, 1) or int;
    face: (F, 3) int.  Returns (B, 3*F, 1) like the PyTorch module."""
    preds_stacked = jnp.stack([p.astype(jnp.float32) for p in preds], axis=0)  # (N,B,V,3)
    gt = gt.astype(jnp.float32)
    N, B, V, _ = preds_stacked.shape
    face = jnp.asarray(face, jnp.int32)
    Fc = int(face.shape[0])

    # ---- lane-dense layout: flatten (B, F) onto a single 128-lane-major axis ----
    Et = _pick_tile_elems(B * Fc)                         # elements per grid step
    lcm_be = (B * Et) // math.gcd(B, Et)
    E = _ceil_to(B * Fc, lcm_be)                          # total padded elements
    Fp = E // B
    M = E // _LANE
    Mt = Et // _LANE
    num_tiles = E // Et

    # Pad the face table (dummy valid index 0) so the gather already produces the
    # padded layout -- no post-gather jnp.pad copy of the biggest tensor.  The
    # padded columns are sliced off the output, so their values never matter.
    face_p = jnp.pad(face, ((0, Fp - Fc), (0, 0)))

    # ---- glue (plain JAX): gather face vertices, split xyz into planes ----
    # TODO(synk): the face gather stays in XLA; an in-kernel gather (manual DMA of
    # the (B,V,3) vertex block, jnp.take on the lane axis) would cut HBM traffic
    # further on HBM-bound generations (v5e) when 3F >> V.
    p_planes, g_planes = [], []
    for v in range(3):
        idx = face_p[:, v]
        gp = preds_stacked[:, :, idx, :]                  # (N, B, Fp, 3)
        gg = gt[:, idx, :]                                # (B, Fp, 3)
        for c in range(3):
            p_planes.append(gp[..., c])                   # (N, B, Fp)
            g_planes.append(gg[..., c])                   # (B, Fp)
    # (vertex*3 + xyz) plane-major; (B, Fp) -> (M, 128) is a free row-major reshape.
    p_packed = jnp.stack(p_planes, axis=1).reshape(N, 9, M, _LANE)
    g_packed = jnp.stack(g_planes, axis=0).reshape(9, M, _LANE)
    # TODO(synk): storing p_packed/g_packed as bf16 in HBM (upcast in-kernel, math
    # kept f32) halves HBM traffic on v6e/v5e; kept f32 here to match the f32
    # reference tolerance exactly.

    if isinstance(valid, int):
        mask = jnp.ones((M, _LANE), jnp.float32)          # PyTorch: valid_mask = 1
    else:
        va = valid.astype(jnp.float32)[..., 0]            # (B, V)
        mask = (va[:, face_p[:, 0]] * va[:, face_p[:, 1]]
                * va[:, face_p[:, 2]]).reshape(M, _LANE)

    # pre-normalized gamma weights (pure Python; no epilogue divide pass)
    ws = [gamma ** (N - i - 1) for i in range(N)]
    wsum = float(sum(ws))
    w = jnp.asarray([x / wsum for x in ws], jnp.float32)

    # honest scoped-VMEM budget: double-buffered blocks + scratch, with headroom
    block_bytes = 4 * Et * (2 * 9 + 2 * 9 + 2 * 1 + 2 * 3 + 3)
    vmem_limit = int(max(8 << 20, 4 * block_bytes))

    out = pl.pallas_call(
        _seq_normal_loss_kernel,
        out_shape=jax.ShapeDtypeStruct((3, M, _LANE), jnp.float32),
        grid_spec=pltpu.PrefetchScalarGridSpec(
            num_scalar_prefetch=0,
            grid=(num_tiles, N),
            in_specs=[
                pl.BlockSpec(memory_space=pltpu.MemorySpace.SMEM),              # weights
                pl.BlockSpec((None, 9, Mt, _LANE), lambda f, i: (i, 0, f, 0)),  # preds
                pl.BlockSpec((9, Mt, _LANE), lambda f, i: (0, f, 0)),           # gt
                pl.BlockSpec((Mt, _LANE), lambda f, i: (f, 0)),                 # mask
            ],
            out_specs=pl.BlockSpec((3, Mt, _LANE), lambda f, i: (0, f, 0)),
            scratch_shapes=[pltpu.VMEM((3, Mt, _LANE), jnp.float32)],           # gt normal * mask
        ),
        compiler_params=pltpu.CompilerParams(
            dimension_semantics=("parallel", "arbitrary"),
            vmem_limit_bytes=vmem_limit),
    )(w, p_packed, g_packed, mask)

    # (3, M, 128) -> (3, B, Fp) -> slice padding -> (B, 3*Fc, 1)
    out = out.reshape(3, B, Fp)[:, :, :Fc]
    return jnp.transpose(out, (1, 0, 2)).reshape(B, 3 * Fc, 1)


# ------------------------- pure-JAX reference -------------------------
def _reference(preds, gt, valid, face, gamma=0.8):
    face = jnp.asarray(face, jnp.int32)

    def normalize(v):
        n = jnp.sqrt(jnp.sum(v * v, axis=2, keepdims=True))
        return v / jnp.maximum(n, _EPS)

    def normal_loss(co, cg, valid):
        f0, f1, f2 = face[:, 0], face[:, 1], face[:, 2]
        v1o = normalize(co[:, f1] - co[:, f0])
        v2o = normalize(co[:, f2] - co[:, f0])
        v3o = normalize(co[:, f2] - co[:, f1])
        v1g = normalize(cg[:, f1] - cg[:, f0])
        v2g = normalize(cg[:, f2] - cg[:, f0])
        ng = normalize(jnp.cross(v1g, v2g, axis=2))
        if isinstance(valid, int):
            vm = 1.0
        else:
            vm = valid[:, f0] * valid[:, f1] * valid[:, f2]
        cos1 = jnp.abs(jnp.sum(v1o * ng, 2, keepdims=True)) * vm
        cos2 = jnp.abs(jnp.sum(v2o * ng, 2, keepdims=True)) * vm
        cos3 = jnp.abs(jnp.sum(v3o * ng, 2, keepdims=True)) * vm
        return jnp.concatenate([cos1, cos2, cos3], axis=1)

    n = len(preds)
    loss, weight = 0.0, 0.0
    for i in range(n):
        iw = gamma ** (n - i - 1)
        loss = loss + iw * normal_loss(preds[i], gt, valid)
        weight = weight + iw
    return loss / weight


if __name__ == "__main__":
    key = jax.random.PRNGKey(0)
    B, V, Fc, N = 2, 16, 20, 3  # batch, vertices, faces, sequence length

    # deterministic synthetic face connectivity
    face = np.stack([np.arange(Fc) % V,
                     (np.arange(Fc) + 1) % V,
                     (np.arange(Fc) + 5) % V], axis=1).astype(np.int32)

    keys = jax.random.split(key, N + 2)
    preds = [jax.random.normal(keys[i], (B, V, 3), jnp.float32) for i in range(N)]
    gt = jax.random.normal(keys[N], (B, V, 3), jnp.float32)
    valid = (jax.random.uniform(keys[N + 1], (B, V, 1)) > 0.2).astype(jnp.float32)

    out = sequence_normal_loss(preds, gt, valid, face, gamma=0.8)
    out = jax.block_until_ready(out)

    ref = _reference(preds, gt, valid, face, gamma=0.8)
    np.testing.assert_allclose(np.asarray(out), np.asarray(ref),
                               rtol=2e-4, atol=2e-5)
    print("KERNEL_OK")
</pallas_src>

<mosaic_0001>
module attributes {stable_mosaic.version = 11 : i64} {
  func.func @_seq_normal_loss_kernel(%arg0: i32, %arg1: i32, %arg2: memref<3xf32, #tpu.memory_space<smem>>, %arg3: memref<1x9x8x128xf32, #tpu.memory_space<vmem>>, %arg4: memref<9x8x128xf32, #tpu.memory_space<vmem>>, %arg5: memref<8x128xf32, #tpu.memory_space<vmem>>, %arg6: memref<3x8x128xf32, #tpu.memory_space<vmem>>, %arg7: memref<3x8x128xf32, #tpu.memory_space<vmem>>) attributes {dimension_semantics = [#tpu.dimension_semantics<parallel>, #tpu.dimension_semantics<arbitrary>], iteration_bounds = array<i64: 1, 3>, scalar_prefetch = 0 : i64, scratch_operands = 1 : i64, tpu.core_type = #tpu.core_type<tc>, window_params = [{transform_indices = @transform_0, window_bounds = array<i64: 3>}, {transform_indices = @transform_1, window_bounds = array<i64: 1, 9, 8, 128>}, {transform_indices = @transform_2, window_bounds = array<i64: 9, 8, 128>}, {transform_indices = @transform_3, window_bounds = array<i64: 8, 128>}, {transform_indices = @transform_4, window_bounds = array<i64: 3, 8, 128>}]} {
    %c0_i32 = arith.constant 0 : i32
    %0 = arith.cmpi eq, %arg1, %c0_i32 : i32
    %1 = arith.extui %0 : i1 to i32
    %c0_i32_0 = arith.constant 0 : i32
    %2 = arith.cmpi ne, %1, %c0_i32_0 : i32
    scf.if %2 {
      %cst_57 = arith.constant 0.000000e+00 : f32
      %107 = vector.broadcast %cst_57 : f32 to vector<3x8x128xf32>
      %c0_58 = arith.constant 0 : index
      %c0_59 = arith.constant 0 : index
      %c0_60 = arith.constant 0 : index
      %108 = vector.load %arg6[%c0_58, %c0_59, %c0_60] : memref<3x8x128xf32, #tpu.memory_space<vmem>>, vector<3x8x128xf32>
      tpu.vector_store %arg6[%c0_58, %c0_59, %c0_60], %107 {strides = array<i32>} : memref<3x8x128xf32, #tpu.memory_space<vmem>>, vector<3x8x128xf32>,
      %c0_61 = arith.constant 0 : index
      %c0_62 = arith.constant 0 : index
      %c0_63 = arith.constant 0 : index
      %109 = vector.load %arg4[%c0_61, %c0_62, %c0_63] : memref<9x8x128xf32, #tpu.memory_space<vmem>>, vector<1x8x128xf32>
      %110 = vector.shape_cast %109 : vector<1x8x128xf32> to vector<8x128xf32>
      %c1_64 = arith.constant 1 : index
      %c0_65 = arith.constant 0 : index
      %c0_66 = arith.constant 0 : index
      %111 = vector.load %arg4[%c1_64, %c0_65, %c0_66] : memref<9x8x128xf32, #tpu.memory_space<vmem>>, vector<1x8x128xf32>
      %112 = vector.shape_cast %111 : vector<1x8x128xf32> to vector<8x128xf32>
      %c2_67 = arith.constant 2 : index
      %c0_68 = arith.constant 0 : index
      %c0_69 = arith.constant 0 : index
      %113 = vector.load %arg4[%c2_67, %c0_68, %c0_69] : memref<9x8x128xf32, #tpu.memory_space<vmem>>, vector<1x8x128xf32>
      %114 = vector.shape_cast %113 : vector<1x8x128xf32> to vector<8x128xf32>
      %c3_70 = arith.constant 3 : index
      %c0_71 = arith.constant 0 : index
      %c0_72 = arith.constant 0 : index
      %115 = vector.load %arg4[%c3_70, %c0_71, %c0_72] : memref<9x8x128xf32, #tpu.memory_space<vmem>>, vector<1x8x128xf32>
      %116 = vector.shape_cast %115 : vector<1x8x128xf32> to vector<8x128xf32>
      %c4_73 = arith.constant 4 : index
      %c0_74 = arith.constant 0 : index
      %c0_75 = arith.constant 0 : index
      %117 = vector.load %arg4[%c4_73, %c0_74, %c0_75] : memref<9x8x128xf32, #tpu.memory_space<vmem>>, vector<1x8x128xf32>
      %118 = vector.shape_cast %117 : vector<1x8x128xf32> to vector<8x128xf32>
      %c5_76 = arith.constant 5 : index
      %c0_77 = arith.constant 0 : index
      %c0_78 = arith.constant 0 : index
      %119 = vector.load %arg4[%c5_76, %c0_77, %c0_78] : memref<9x8x128xf32, #tpu.memory_space<vmem>>, vector<1x8x128xf32>
      %120 = vector.shape_cast %119 : vector<1x8x128xf32> to vector<8x128xf32>
      %c6_79 = arith.constant 6 : index
      %c0_80 = arith.constant 0 : index
      %c0_81 = arith.constant 0 : index
      %121 = vector.load %arg4[%c6_79, %c0_80, %c0_81] : memref<9x8x128xf32, #tpu.memory_space<vmem>>, vector<1x8x128xf32>
      %122 = vector.shape_cast %121 : vector<1x8x128xf32> to vector<8x128xf32>
      %c7_82 = arith.constant 7 : index
      %c0_83 = arith.constant 0 : index
      %c0_84 = arith.constant 0 : index
      %123 = vector.load %arg4[%c7_82, %c0_83, %c0_84] : memref<9x8x128xf32, #tpu.memory_space<vmem>>, vector<1x8x128xf32>
      %124 = vector.shape_cast %123 : vector<1x8x128xf32> to vector<8x128xf32>
      %c8_85 = arith.constant 8 : index
      %c0_86 = arith.constant 0 : index
      %c0_87 = arith.constant 0 : index
      %125 = vector.load %arg4[%c8_85, %c0_86, %c0_87] : memref<9x8x128xf32, #tpu.memory_space<vmem>>, vector<1x8x128xf32>
      %126 = vector.shape_cast %125 : vector<1x8x128xf32> to vector<8x128xf32>
      %127 = arith.subf %116, %110 : vector<8x128xf32>
      %128 = arith.subf %118, %112 : vector<8x128xf32>
      %129 = arith.subf %120, %114 : vector<8x128xf32>
      %130 = arith.subf %122, %110 : vector<8x128xf32>
      %131 = arith.subf %124, %112 : vector<8x128xf32>
      %132 = arith.subf %126, %114 : vector<8x128xf32>
      %133 = arith.mulf %127, %127 : vector<8x128xf32>
      %134 = arith.mulf %128, %128 : vector<8x128xf32>
      %135 = arith.addf %133, %134 : vector<8x128xf32>
      %136 = arith.mulf %129, %129 : vector<8x128xf32>
      %137 = arith.addf %135, %136 : vector<8x128xf32>
      %cst_88 = arith.constant 1.000000e-24 : f32
      %138 = vector.broadcast %cst_88 : f32 to vector<8x128xf32>
      %139 = arith.maximumf %137, %138 : vector<8x128xf32>
      %140 = math.rsqrt %139 : vector<8x128xf32>
      %141 = arith.mulf %130, %130 : vector<8x128xf32>
      %142 = arith.mulf %131, %131 : vector<8x128xf32>
      %143 = arith.addf %141, %142 : vector<8x128xf32>
      %144 = arith.mulf %132, %132 : vector<8x128xf32>
      %145 = arith.addf %143, %144 : vector<8x128xf32>
      %cst_89 = arith.constant 1.000000e-24 : f32
      %146 = vector.broadcast %cst_89 : f32 to vector<8x128xf32>
      %147 = arith.maximumf %145, %146 : vector<8x128xf32>
      %148 = math.rsqrt %147 : vector<8x128xf32>
      %149 = arith.mulf %127, %140 : vector<8x128xf32>
      %150 = arith.mulf %128, %140 : vector<8x128xf32>
      %151 = arith.mulf %129, %140 : vector<8x128xf32>
      %152 = arith.mulf %130, %148 : vector<8x128xf32>
      %153 = arith.mulf %131, %148 : vector<8x128xf32>
      %154 = arith.mulf %132, %148 : vector<8x128xf32>
      %155 = arith.mulf %150, %154 : vector<8x128xf32>
      %156 = arith.mulf %151, %153 : vector<8x128xf32>
      %157 = arith.subf %155, %156 : vector<8x128xf32>
      %158 = arith.mulf %151, %152 : vector<8x128xf32>
      %159 = arith.mulf %149, %154 : vector<8x128xf32>
      %160 = arith.subf %158, %159 : vector<8x128xf32>
      %161 = arith.mulf %149, %153 : vector<8x128xf32>
      %162 = arith.mulf %150, %152 : vector<8x128xf32>
      %163 = arith.subf %161, %162 : vector<8x128xf32>
      %164 = arith.mulf %157, %157 : vector<8x128xf32>
      %165 = arith.mulf %160, %160 : vector<8x128xf32>
      %166 = arith.addf %164, %165 : vector<8x128xf32>
      %167 = arith.mulf %163, %163 : vector<8x128xf32>
      %168 = arith.addf %166, %167 : vector<8x128xf32>
      %cst_90 = arith.constant 1.000000e-24 : f32
      %169 = vector.broadcast %cst_90 : f32 to vector<8x128xf32>
      %170 = arith.maximumf %168, %169 : vector<8x128xf32>
      %171 = math.rsqrt %170 : vector<8x128xf32>
      %c0_91 = arith.constant 0 : index
      %c0_92 = arith.constant 0 : index
      %172 = vector.load %arg5[%c0_91, %c0_92] : memref<8x128xf32, #tpu.memory_space<vmem>>, vector<8x128xf32>
      %173 = arith.mulf %171, %172 : vector<8x128xf32>
      %174 = arith.mulf %157, %173 : vector<8x128xf32>
      %c0_93 = arith.constant 0 : index
      %c0_94 = arith.constant 0 : index
      %c0_95 = arith.constant 0 : index
      %175 = vector.load %arg7[%c0_93, %c0_94, %c0_95] : memref<3x8x128xf32, #tpu.memory_space<vmem>>, vector<1x8x128xf32>
      %176 = vector.shape_cast %175 : vector<1x8x128xf32> to vector<8x128xf32>
      %177 = vector.shape_cast %174 : vector<8x128xf32> to vector<1x8x128xf32>
      tpu.vector_store %arg7[%c0_93, %c0_94, %c0_95], %177 {strides = array<i32>} : memref<3x8x128xf32, #tpu.memory_space<vmem>>, vector<1x8x128xf32>,
      %178 = arith.mulf %160, %173 : vector<8x128xf32>
      %c1_96 = arith.constant 1 : index
      %c0_97 = arith.constant 0 : index
      %c0_98 = arith.constant 0 : index
      %179 = vector.load %arg7[%c1_96, %c0_97, %c0_98] : memref<3x8x128xf32, #tpu.memory_space<vmem>>, vector<1x8x128xf32>
      %180 = vector.shape_cast %179 : vector<1x8x128xf32> to vector<8x128xf32>
      %181 = vector.shape_cast %178 : vector<8x128xf32> to vector<1x8x128xf32>
      tpu.vector_store %arg7[%c1_96, %c0_97, %c0_98], %181 {strides = array<i32>} : memref<3x8x128xf32, #tpu.memory_space<vmem>>, vector<1x8x128xf32>,
      %182 = arith.mulf %163, %173 : vector<8x128xf32>
      %c2_99 = arith.constant 2 : index
      %c0_100 = arith.constant 0 : index
      %c0_101 = arith.constant 0 : index
      %183 = vector.load %arg7[%c2_99, %c0_100, %c0_101] : memref<3x8x128xf32, #tpu.memory_space<vmem>>, vector<1x8x128xf32>
      %184 = vector.shape_cast %183 : vector<1x8x128xf32> to vector<8x128xf32>
      %185 = vector.shape_cast %182 : vector<8x128xf32> to vector<1x8x128xf32>
      tpu.vector_store %arg7[%c2_99, %c0_100, %c0_101], %185 {strides = array<i32>} : memref<3x8x128xf32, #tpu.memory_space<vmem>>, vector<1x8x128xf32>,
    } else {
    }
    %c0 = arith.constant 0 : index
    %c0_1 = arith.constant 0 : index
    %c0_2 = arith.constant 0 : index
    %c0_3 = arith.constant 0 : index
    %3 = vector.load %arg3[%c0, %c0_1, %c0_2, %c0_3] : memref<1x9x8x128xf32, #tpu.memory_space<vmem>>, vector<1x1x8x128xf32>
    %4 = vector.shape_cast %3 : vector<1x1x8x128xf32> to vector<8x128xf32>
    %c0_4 = arith.constant 0 : index
    %c1 = arith.constant 1 : index
    %c0_5 = arith.constant 0 : index
    %c0_6 = arith.constant 0 : index
    %5 = vector.load %arg3[%c0_4, %c1, %c0_5, %c0_6] : memref<1x9x8x128xf32, #tpu.memory_space<vmem>>, vector<1x1x8x128xf32>
    %6 = vector.shape_cast %5 : vector<1x1x8x128xf32> to vector<8x128xf32>
    %c0_7 = arith.constant 0 : index
    %c2 = arith.constant 2 : index
    %c0_8 = arith.constant 0 : index
    %c0_9 = arith.constant 0 : index
    %7 = vector.load %arg3[%c0_7, %c2, %c0_8, %c0_9] : memref<1x9x8x128xf32, #tpu.memory_space<vmem>>, vector<1x1x8x128xf32>
    %8 = vector.shape_cast %7 : vector<1x1x8x128xf32> to vector<8x128xf32>
    %c0_10 = arith.constant 0 : index
    %c3 = arith.constant 3 : index
    %c0_11 = arith.constant 0 : index
    %c0_12 = arith.constant 0 : index
    %9 = vector.load %arg3[%c0_10, %c3, %c0_11, %c0_12] : memref<1x9x8x128xf32, #tpu.memory_space<vmem>>, vector<1x1x8x128xf32>
    %10 = vector.shape_cast %9 : vector<1x1x8x128xf32> to vector<8x128xf32>
    %c0_13 = arith.constant 0 : index
    %c4 = arith.constant 4 : index
    %c0_14 = arith.constant 0 : index
    %c0_15 = arith.constant 0 : index
    %11 = vector.load %arg3[%c0_13, %c4, %c0_14, %c0_15] : memref<1x9x8x128xf32, #tpu.memory_space<vmem>>, vector<1x1x8x128xf32>
    %12 = vector.shape_cast %11 : vector<1x1x8x128xf32> to vector<8x128xf32>
    %c0_16 = arith.constant 0 : index
    %c5 = arith.constant 5 : index
    %c0_17 = arith.constant 0 : index
    %c0_18 = arith.constant 0 : index
    %13 = vector.load %arg3[%c0_16, %c5, %c0_17, %c0_18] : memref<1x9x8x128xf32, #tpu.memory_space<vmem>>, vector<1x1x8x128xf32>
    %14 = vector.shape_cast %13 : vector<1x1x8x128xf32> to vector<8x128xf32>
    %c0_19 = arith.constant 0 : index
    %c6 = arith.constant 6 : index
    %c0_20 = arith.constant 0 : index
    %c0_21 = arith.constant 0 : index
    %15 = vector.load %arg3[%c0_19, %c6, %c0_20, %c0_21] : memref<1x9x8x128xf32, #tpu.memory_space<vmem>>, vector<1x1x8x128xf32>
    %16 = vector.shape_cast %15 : vector<1x1x8x128xf32> to vector<8x128xf32>
    %c0_22 = arith.constant 0 : index
    %c7 = arith.constant 7 : index
    %c0_23 = arith.constant 0 : index
    %c0_24 = arith.constant 0 : index
    %17 = vector.load %arg3[%c0_22, %c7, %c0_23, %c0_24] : memref<1x9x8x128xf32, #tpu.memory_space<vmem>>, vector<1x1x8x128xf32>
    %18 = vector.shape_cast %17 : vector<1x1x8x128xf32> to vector<8x128xf32>
    %c0_25 = arith.constant 0 : index
    %c8 = arith.constant 8 : index
    %c0_26 = arith.constant 0 : index
    %c0_27 = arith.constant 0 : index
    %19 = vector.load %arg3[%c0_25, %c8, %c0_26, %c0_27] : memref<1x9x8x128xf32, #tpu.memory_space<vmem>>, vector<1x1x8x128xf32>
    %20 = vector.shape_cast %19 : vector<1x1x8x128xf32> to vector<8x128xf32>
    %c0_28 = arith.constant 0 : index
    %c0_29 = arith.constant 0 : index
    %c0_30 = arith.constant 0 : index
    %21 = vector.load %arg7[%c0_28, %c0_29, %c0_30] : memref<3x8x128xf32, #tpu.memory_space<vmem>>, vector<1x8x128xf32>
    %22 = vector.shape_cast %21 : vector<1x8x128xf32> to vector<8x128xf32>
    %c1_31 = arith.constant 1 : index
    %c0_32 = arith.constant 0 : index
    %c0_33 = arith.constant 0 : index
    %23 = vector.load %arg7[%c1_31, %c0_32, %c0_33] : memref<3x8x128xf32, #tpu.memory_space<vmem>>, vector<1x8x128xf32>
    %24 = vector.shape_cast %23 : vector<1x8x128xf32> to vector<8x128xf32>
    %c2_34 = arith.constant 2 : index
    %c0_35 = arith.constant 0 : index
    %c0_36 = arith.constant 0 : index
    %25 = vector.load %arg7[%c2_34, %c0_35, %c0_36] : memref<3x8x128xf32, #tpu.memory_space<vmem>>, vector<1x8x128xf32>
    %26 = vector.shape_cast %25 : vector<1x8x128xf32> to vector<8x128xf32>
    %27 = arith.index_cast %arg1 : i32 to index
    %28 = memref.load %arg2[%27] : memref<3xf32, #tpu.memory_space<smem>>
    %29 = arith.subf %10, %4 : vector<8x128xf32>
    %30 = arith.subf %12, %6 : vector<8x128xf32>
    %31 = arith.subf %14, %8 : vector<8x128xf32>
    %32 = arith.subf %16, %4 : vector<8x128xf32>
    %33 = arith.subf %18, %6 : vector<8x128xf32>
    %34 = arith.subf %20, %8 : vector<8x128xf32>
    %35 = arith.subf %16, %10 : vector<8x128xf32>
    %36 = arith.subf %18, %12 : vector<8x128xf32>
    %37 = arith.subf %20, %14 : vector<8x128xf32>
    %c0_37 = arith.constant 0 : index
    %c0_38 = arith.constant 0 : index
    %c0_39 = arith.constant 0 : index
    %38 = vector.load %arg6[%c0_37, %c0_38, %c0_39] : memref<3x8x128xf32, #tpu.memory_space<vmem>>, vector<1x8x128xf32>
    %39 = vector.shape_cast %38 : vector<1x8x128xf32> to vector<8x128xf32>
    %40 = arith.mulf %29, %22 : vector<8x128xf32>
    %41 = arith.mulf %30, %24 : vector<8x128xf32>
    %42 = arith.addf %40, %41 : vector<8x128xf32>
    %43 = arith.mulf %31, %26 : vector<8x128xf32>
    %44 = arith.addf %42, %43 : vector<8x128xf32>
    %45 = math.absf %44 : vector<8x128xf32>
    %46 = arith.mulf %29, %29 : vector<8x128xf32>
    %47 = arith.mulf %30, %30 : vector<8x128xf32>
    %48 = arith.addf %46, %47 : vector<8x128xf32>
    %49 = arith.mulf %31, %31 : vector<8x128xf32>
    %50 = arith.addf %48, %49 : vector<8x128xf32>
    %cst = arith.constant 1.000000e-24 : f32
    %51 = vector.broadcast %cst : f32 to vector<8x128xf32>
    %52 = arith.maximumf %50, %51 : vector<8x128xf32>
    %53 = math.rsqrt %52 : vector<8x128xf32>
    %54 = arith.mulf %45, %53 : vector<8x128xf32>
    %55 = vector.broadcast %28 : f32 to vector<8x128xf32>
    %56 = arith.mulf %54, %55 : vector<8x128xf32>
    %57 = arith.addf %39, %56 : vector<8x128xf32>
    %c0_40 = arith.constant 0 : index
    %c0_41 = arith.constant 0 : index
    %c0_42 = arith.constant 0 : index
    %58 = vector.load %arg6[%c0_40, %c0_41, %c0_42] : memref<3x8x128xf32, #tpu.memory_space<vmem>>, vector<1x8x128xf32>
    %59 = vector.shape_cast %58 : vector<1x8x128xf32> to vector<8x128xf32>
    %60 = vector.shape_cast %57 : vector<8x128xf32> to vector<1x8x128xf32>
    tpu.vector_store %arg6[%c0_40, %c0_41, %c0_42], %60 {strides = array<i32>} : memref<3x8x128xf32, #tpu.memory_space<vmem>>, vector<1x8x128xf32>,
    %c1_43 = arith.constant 1 : index
    %c0_44 = arith.constant 0 : index
    %c0_45 = arith.constant 0 : index
    %61 = vector.load %arg6[%c1_43, %c0_44, %c0_45] : memref<3x8x128xf32, #tpu.memory_space<vmem>>, vector<1x8x128xf32>
    %62 = vector.shape_cast %61 : vector<1x8x128xf32> to vector<8x128xf32>
    %63 = arith.mulf %32, %22 : vector<8x128xf32>
    %64 = arith.mulf %33, %24 : vector<8x128xf32>
    %65 = arith.addf %63, %64 : vector<8x128xf32>
    %66 = arith.mulf %34, %26 : vector<8x128xf32>
    %67 = arith.addf %65, %66 : vector<8x128xf32>
    %68 = math.absf %67 : vector<8x128xf32>
    %69 = arith.mulf %32, %32 : vector<8x128xf32>
    %70 = arith.mulf %33, %33 : vector<8x128xf32>
    %71 = arith.addf %69, %70 : vector<8x128xf32>
    %72 = arith.mulf %34, %34 : vector<8x128xf32>
    %73 = arith.addf %71, %72 : vector<8x128xf32>
    %cst_46 = arith.constant 1.000000e-24 : f32
    %74 = vector.broadcast %cst_46 : f32 to vector<8x128xf32>
    %75 = arith.maximumf %73, %74 : vector<8x128xf32>
    %76 = math.rsqrt %75 : vector<8x128xf32>
    %77 = arith.mulf %68, %76 : vector<8x128xf32>
    %78 = vector.broadcast %28 : f32 to vector<8x128xf32>
    %79 = arith.mulf %77, %78 : vector<8x128xf32>
    %80 = arith.addf %62, %79 : vector<8x128xf32>
    %c1_47 = arith.constant 1 : index
    %c0_48 = arith.constant 0 : index
    %c0_49 = arith.constant 0 : index
    %81 = vector.load %arg6[%c1_47, %c0_48, %c0_49] : memref<3x8x128xf32, #tpu.memory_space<vmem>>, vector<1x8x128xf32>
    %82 = vector.shape_cast %81 : vector<1x8x128xf32> to vector<8x128xf32>
    %83 = vector.shape_cast %80 : vector<8x128xf32> to vector<1x8x128xf32>
    tpu.vector_store %arg6[%c1_47, %c0_48, %c0_49], %83 {strides = array<i32>} : memref<3x8x128xf32, #tpu.memory_space<vmem>>, vector<1x8x128xf32>,
    %c2_50 = arith.constant 2 : index
    %c0_51 = arith.constant 0 : index
    %c0_52 = arith.constant 0 : index
    %84 = vector.load %arg6[%c2_50, %c0_51, %c0_52] : memref<3x8x128xf32, #tpu.memory_space<vmem>>, vector<1x8x128xf32>
    %85 = vector.shape_cast %84 : vector<1x8x128xf32> to vector<8x128xf32>
    %86 = arith.mulf %35, %22 : vector<8x128xf32>
    %87 = arith.mulf %36, %24 : vector<8x128xf32>
    %88 = arith.addf %86, %87 : vector<8x128xf32>
    %89 = arith.mulf %37, %26 : vector<8x128xf32>
    %90 = arith.addf %88, %89 : vector<8x128xf32>
    %91 = math.absf %90 : vector<8x128xf32>
    %92 = arith.mulf %35, %35 : vector<8x128xf32>
    %93 = arith.mulf %36, %36 : vector<8x128xf32>
    %94 = arith.addf %92, %93 : vector<8x128xf32>
    %95 = arith.mulf %37, %37 : vector<8x128xf32>
    %96 = arith.addf %94, %95 : vector<8x128xf32>
    %cst_53 = arith.constant 1.000000e-24 : f32
    %97 = vector.broadcast %cst_53 : f32 to vector<8x128xf32>
    %98 = arith.maximumf %96, %97 : vector<8x128xf32>
    %99 = math.rsqrt %98 : vector<8x128xf32>
    %100 = arith.mulf %91, %99 : vector<8x128xf32>
    %101 = vector.broadcast %28 : f32 to vector<8x128xf32>
    %102 = arith.mulf %100, %101 : vector<8x128xf32>
    %103 = arith.addf %85, %102 : vector<8x128xf32>
    %c2_54 = arith.constant 2 : index
    %c0_55 = arith.constant 0 : index
    %c0_56 = arith.constant 0 : index
    %104 = vector.load %arg6[%c2_54, %c0_55, %c0_56] : memref<3x8x128xf32, #tpu.memory_space<vmem>>, vector<1x8x128xf32>
    %105 = vector.shape_cast %104 : vector<1x8x128xf32> to vector<8x128xf32>
    %106 = vector.shape_cast %103 : vector<8x128xf32> to vector<1x8x128xf32>
    tpu.vector_store %arg6[%c2_54, %c0_55, %c0_56], %106 {strides = array<i32>} : memref<3x8x128xf32, #tpu.memory_space<vmem>>, vector<1x8x128xf32>,
    return
  }
  func.func @transform_0(%arg0: i32, %arg1: i32) -> i32 {
    %c0_i32 = arith.constant 0 : i32
    %c0_i32_0 = arith.constant 0 : i32
    return %c0_i32 : i32
  }
  func.func @transform_1(%arg0: i32, %arg1: i32) -> (i32, i32, i32, i32) {
    %c0_i32 = arith.constant 0 : i32
    %c0_i32_0 = arith.constant 0 : i32
    %c0_i32_1 = arith.constant 0 : i32
    return %arg1, %c0_i32, %arg0, %c0_i32_0 : i32, i32, i32, i32
  }
  func.func @transform_2(%arg0: i32, %arg1: i32) -> (i32, i32, i32) {
    %c0_i32 = arith.constant 0 : i32
    %c0_i32_0 = arith.constant 0 : i32
    %c0_i32_1 = arith.constant 0 : i32
    return %c0_i32, %arg0, %c0_i32_0 : i32, i32, i32
  }
  func.func @transform_3(%arg0: i32, %arg1: i32) -> (i32, i32) {
    %c0_i32 = arith.constant 0 : i32
    %c0_i32_0 = arith.constant 0 : i32
    return %arg0, %c0_i32 : i32, i32
  }
  func.func @transform_4(%arg0: i32, %arg1: i32) -> (i32, i32, i32) {
    %c0_i32 = arith.constant 0 : i32
    %c0_i32_0 = arith.constant 0 : i32
    %c0_i32_1 = arith.constant 0 : i32
    return %c0_i32, %arg0, %c0_i32_0 : i32, i32, i32
  }
}

</mosaic_0001>

<llo_original>
// kernel: tpu_custom_call.1
$region0: #{tpu_custom_call.1}
  #allocation0 [shape = 'u32[]', space=smem, size = 0x4, offset = 0x4, fixed_abs, tag = 'smem constant byte address 0x4 - core index']
  #allocation1 [shape = 'u32[144,128]{1,0:T(1,128)}', space=vmem, size = 0x12000, scoped, tag = 'internal scratch']
  #allocation2 [shape = 'f32[3,8,128]{2,1,0:T(8,128)}', space=vmem, size = 0x3000, scoped, tag = 'scratch operand']
  %s0 = inlined_call_operand.hbm [shape: f32[3], index: 0, kind: input, shape index: {}]
  %s1 = inlined_call_operand.hbm [shape: f32[3,9,8,128], index: 1, kind: input, shape index: {}]
  %s2 = inlined_call_operand.hbm [shape: f32[9,8,128], index: 2, kind: input, shape index: {}]
  %s3 = inlined_call_operand.vmem [shape: f32[8,128], index: 3, kind: input, shape index: {}]
  %s4 = inlined_call_operand.hbm [shape: f32[3,8,128], index: 4, kind: output, shape index: {}]
  %s5 = sld [smem:[#allocation0]]
  $region65: #{tpu_custom_call.1} parent=0
    _
  %s7 = ssub.s32 1, %s5
  %s8 = scalar_select 0, %s7, %s5
  $region1: #{tpu_custom_call.1} parent=0
    #allocation3 [shape = 'u8[512]{0}', space=smem, size = 0x200, scoped, tag = 'input window, operand 0, single buffered']
    #allocation4 [shape = 's32[2]{0}', space=sflag, size = 0x8, scoped, tag = 'scoped memory for tpu_custom_call.1']
    #allocation5 [shape = 's32[2]{0}', space=sflag, size = 0x8, scoped, tag = 'scoped memory for tpu_custom_call.1']
    #allocation6 [shape = 's32[2]{0}', space=sflag, size = 0x8, scoped, tag = 'scoped memory for tpu_custom_call.1']
    #allocation7 [shape = 'u8[73728]{0}', space=vmem, size = 0x12000, scoped, tag = 'input window, operand 1']
    #allocation8 [shape = 'u8[36864]{0}', space=vmem, size = 0x9000, scoped, tag = 'input window, operand 2, single buffered']
    #allocation9 [shape = 's32[1]{0}', space=sflag, size = 0x4, scoped, tag = 'scoped memory for tpu_custom_call.1']
    #allocation10 [shape = 'u8[12288]{0}', space=vmem, size = 0x3000, scoped, tag = 'output window, operand 0, single buffered']
    %9 = vsyncpa [#allocation6], 0
    %10 = vsyncpa [#allocation4], 0
    %s11 = scalar_lea.sflag [#allocation4], 1
    %12 = vsyncpa %s11, 0
    %13 = vsyncpa [#allocation9], 0
    %14 = vsyncpa [#allocation5], 0
    loop: start=0, step=1, limit=5
    $region2: #{tpu_custom_call.1} parent=1 // loop_pre_header
      _
    $region3: #{tpu_custom_call.1} parent=1 // loop_header
      %s16 = sphi 0, %s20
      %p17 = scmp.ge.s32.totalorder %s16, 5
      %s23 = sphi 0, %s35
      %s24 = sphi 0, %s31
      %s25 = sphi 0, %s23
      %s26 = sphi 0, %s24
      %s27 = sphi 0, %s25
      %s28 = sphi 0, %s26
      %s36 = sphi 0, %s36
      %s38 = sphi 0, %s36
      %s39 = sphi 0, %s38
      %s53 = sphi 0, %s39
      %s61 = sphi 0, %s63
      %s64 = sphi 0, %s61
      %s65 = sphi 0, %s64
      %s81 = sphi 0, %s65
      %s87 = sphi 0, %s89
      %s90 = sphi 0, %s87
      %s91 = sphi 0, %s90
      %s107 = sphi 0, %s91
      %s113 = sphi 0, %s115
      %s116 = sphi 0, %s113
      %s117 = sphi 0, %s116
      %s133 = sphi 0, %s117
      %s139 = sphi 0, %s141
      %s142 = sphi 0, %s139
      %s143 = sphi 0, %s142
      %s159 = sphi 0, %s143
    $region4: #{tpu_custom_call.1} parent=1 // loop_header_branch
      %19 = sbr.rel (%p17) target = $region8
    $region5: #{tpu_custom_call.1} parent=1 // loop_body
      %s21 = ssub.s32 %s16, 1
      %s22 = ssub.s32 %s16, 2
      %s29 = sadd.s32 1, %s24
      %p30 = scmp.ge.s32.totalorder %s29, 3
      %s31 = scalar_select %p30, 0, %s29
      %s32 = sadd.s32 1, %s23
      %s33 = scalar_select %p30, %s32, %s23
      %p34 = scmp.ge.s32.totalorder %s33, 1
      %s35 = scalar_select %p34, 0, %s33
      %s37 = sadd.s32 %s36, 1
      %p40 = scmp.eq.s32.totalorder %s16, 2
      %p41 = scmp.ne.s32.totalorder %s36, %s38
      %p42 = scmp.eq.s32.totalorder %s16, 0
      %p43 = por %p41, %p42
      %p44 = scmp.ne.s32.totalorder %s36, %s38
      %p45 = scmp.eq.s32.totalorder %s21, 2
      %p46 = por %p44, %p45
      %p47 = scmp.ne.s32.totalorder %s38, %s39
      %p48 = scmp.eq.s32.totalorder %s21, 0
      %p49 = por %p47, %p48
      %p50 = scmp.ne.s32.totalorder %s38, %s39
      %p51 = scmp.eq.s32.totalorder %s22, 2
      %p52 = por %p50, %p51
      %p54 = scmp.ne.s32.totalorder %s39, %s53
      %p55 = scmp.eq.s32.totalorder %s22, 0
      %p56 = por %p54, %p55
      %s57 = ssub.s32 %s24, %s31
      %s58 = ssub.s32 %s23, %s35
      %s59 = sor.u32 %s57, %s58
      %p60 = scmp.eq.s32.totalorder %s59, 0
      %s62 = sadd.s32 %s61, 1
      %s63 = scalar_select %p60, %s61, %s62
      %p66 = pneg %p60
      %p67 = scmp.eq.s32.totalorder %s16, 2
      %p68 = por %p66, %p67
      %p69 = scmp.ne.s32.totalorder %s61, %s64
      %p70 = scmp.eq.s32.totalorder %s16, 0
      %p71 = por %p69, %p70
      %p72 = scmp.ne.s32.totalorder %s61, %s64
      %p73 = scmp.eq.s32.totalorder %s21, 2
      %p74 = por %p72, %p73
      %p75 = scmp.ne.s32.totalorder %s64, %s65
      %p76 = scmp.eq.s32.totalorder %s21, 0
      %p77 = por %p75, %p76
      %p78 = scmp.ne.s32.totalorder %s64, %s65
      %p79 = scmp.eq.s32.totalorder %s22, 2
      %p80 = por %p78, %p79
      %p82 = scmp.ne.s32.totalorder %s65, %s81
      %p83 = scmp.eq.s32.totalorder %s22, 0
      %p84 = por %p82, %p83
      %s85 = ssub.s32 %s23, %s35
      %p86 = scmp.eq.s32.totalorder %s85, 0
      %s88 = sadd.s32 %s87, 1
      %s89 = scalar_select %p86, %s87, %s88
      %p92 = pneg %p86
      %p93 = scmp.eq.s32.totalorder %s16, 2
      %p94 = por %p92, %p93
      %p95 = scmp.ne.s32.totalorder %s87, %s90
      %p96 = scmp.eq.s32.totalorder %s16, 0
      %p97 = por %p95, %p96
      %p98 = scmp.ne.s32.totalorder %s87, %s90
      %p99 = scmp.eq.s32.totalorder %s21, 2
      %p100 = por %p98, %p99
      %p101 = scmp.ne.s32.totalorder %s90, %s91
      %p102 = scmp.eq.s32.totalorder %s21, 0
      %p103 = por %p101, %p102
      %p104 = scmp.ne.s32.totalorder %s90, %s91
      %p105 = scmp.eq.s32.totalorder %s22, 2
      %p106 = por %p104, %p105
      %p108 = scmp.ne.s32.totalorder %s91, %s107
      %p109 = scmp.eq.s32.totalorder %s22, 0
      %p110 = por %p108, %p109
      %s111 = ssub.s32 %s23, %s35
      %p112 = scmp.eq.s32.totalorder %s111, 0
      %s114 = sadd.s32 %s113, 1
      %s115 = scalar_select %p112, %s113, %s114
      %p118 = pneg %p112
      %p119 = scmp.eq.s32.totalorder %s16, 2
      %p120 = por %p118, %p119
      %p121 = scmp.ne.s32.totalorder %s113, %s116
      %p122 = scmp.eq.s32.totalorder %s16, 0
      %p123 = por %p121, %p122
      %p124 = scmp.ne.s32.totalorder %s113, %s116
      %p125 = scmp.eq.s32.totalorder %s21, 2
      %p126 = por %p124, %p125
      %p127 = scmp.ne.s32.totalorder %s116, %s117
      %p128 = scmp.eq.s32.totalorder %s21, 0
      %p129 = por %p127, %p128
      %p130 = scmp.ne.s32.totalorder %s116, %s117
      %p131 = scmp.eq.s32.totalorder %s22, 2
      %p132 = por %p130, %p131
      %p134 = scmp.ne.s32.totalorder %s117, %s133
      %p135 = scmp.eq.s32.totalorder %s22, 0
      %p136 = por %p134, %p135
      %s137 = ssub.s32 %s23, %s35
      %p138 = scmp.eq.s32.totalorder %s137, 0
      %s140 = sadd.s32 %s139, 1
      %s141 = scalar_select %p138, %s139, %s140
      %p144 = pneg %p138
      %p145 = scmp.eq.s32.totalorder %s16, 2
      %p146 = por %p144, %p145
      %p147 = scmp.ne.s32.totalorder %s139, %s142
      %p148 = scmp.eq.s32.totalorder %s16, 0
      %p149 = por %p147, %p148
      %p150 = scmp.ne.s32.totalorder %s139, %s142
      %p151 = scmp.eq.s32.totalorder %s21, 2
      %p152 = por %p150, %p151
      %p153 = scmp.ne.s32.totalorder %s142, %s143
      %p154 = scmp.eq.s32.totalorder %s21, 0
      %p155 = por %p153, %p154
      %p156 = scmp.ne.s32.totalorder %s142, %s143
      %p157 = scmp.eq.s32.totalorder %s22, 2
      %p158 = por %p156, %p157
      %p160 = scmp.ne.s32.totalorder %s143, %s159
      %p161 = scmp.eq.s32.totalorder %s22, 0
      %p162 = por %p160, %p161
      %p163 = scmp.le.s32.totalorder 1, %s16
      %p164 = scmp.lt.s32.totalorder %s16, 4
      %p165 = pnand %p163, %p164
      %p166 = pneg %p165
      // Predicated region
      $region9: #{tpu_custom_call.1} parent=5 // pred_check
        _
      $region10: #{tpu_custom_call.1} parent=5 // pred_check_branch
        %168 = sbr.rel (%p165) target = $region12
      $region11: #{tpu_custom_call.1} parent=5 // pred_region
        %s169 = ssub.s32 %s16, 1
        // Predicated region
        $region13: #{tpu_custom_call.1} parent=11 // pred_check
          %p170 = pneg %p49
        $region14: #{tpu_custom_call.1} parent=11 // pred_check_branch
          %172 = sbr.rel (%p170) target = $region16
        $region15: #{tpu_custom_call.1} parent=11 // pred_region
          %s174 = ssub.s32 16, 16
          %175 = vsyncadd [#allocation6], %s174
          %178 = dma.hbm_to_smem %s0, 16, [#allocation3], [#allocation6]
        $region16: #{tpu_custom_call.1} parent=11 // pred_fallthru
          _
        // Predicated region
        $region17: #{tpu_custom_call.1} parent=11 // pred_check
          %p179 = pneg %p103
        $region18: #{tpu_custom_call.1} parent=11 // pred_check_branch
          %181 = sbr.rel (%p179) target = $region20
        $region19: #{tpu_custom_call.1} parent=11 // pred_region
          %s183 = ssub.s32 1152, 1152
          %184 = vsyncadd [#allocation9], %s183
          %s185 = smul.addr %s25, 128
          %s186 = scalar_lea.hbm %s2, %s185
          %s187 = sshll.u32 [#allocation8], 4
          %s188 = int_to_ptr.vmem [resolvable:$true] %s187
          %193 = dma.hbm_to_vmem [thread:$0]  %s186, 1152, %s188, [#allocation9], 128, 128, 8
        $region20: #{tpu_custom_call.1} parent=11 // pred_fallthru
          _
        // Predicated region
        $region21: #{tpu_custom_call.1} parent=11 // pred_check
          %p194 = pneg %p129
        $region22: #{tpu_custom_call.1} parent=11 // pred_check_branch
          %196 = sbr.rel (%p194) target = $region24
        $region23: #{tpu_custom_call.1} parent=11 // pred_region
          %p197 = scmp.lt.s32.totalorder %s25, 0
          %s198 = scalar_select %p197, %s25, 0
          %s199 = smul.addr %s198, 8
          %s200 = scalar_lea.vmem %s3, %s199
        $region24: #{tpu_custom_call.1} parent=11 // pred_fallthru
          _
      $region12: #{tpu_custom_call.1} parent=5 // pred_fallthru
        _
      %p201 = scmp.lt.s32.totalorder %s16, 3
      // Predicated region
      $region25: #{tpu_custom_call.1} parent=5 // pred_check
        %p202 = pneg %p201
      $region26: #{tpu_custom_call.1} parent=5 // pred_check_branch
        %204 = sbr.rel (%p202) target = $region28
      $region27: #{tpu_custom_call.1} parent=5 // pred_region
        // Predicated region
        $region29: #{tpu_custom_call.1} parent=27 // pred_check
          %p205 = pneg %p71
        $region30: #{tpu_custom_call.1} parent=27 // pred_check_branch
          %207 = sbr.rel (%p205) target = $region32
        $region31: #{tpu_custom_call.1} parent=27 // pred_region
          %s208 = sand.u32 %s61, 1
          %s209 = scalar_lea.sflag [#allocation4], %s208
          %s210 = sand.u32 %s61, 1
          %s211 = smul.addr %s210, 72
          %s212 = scalar_lea.vmem [#allocation7], %s211
          %s214 = ssub.s32 1152, 1152
          %215 = vsyncadd %s209, %s214
          %s216 = smul.addr %s24, 9
          %s217 = sadd.s32 %s23, %s216
          %s218 = smul.addr %s217, 128
          %s219 = scalar_lea.hbm %s1, %s218
          %s220 = sshll.u32 %s212, 4
          %s221 = int_to_ptr.vmem [resolvable:$true] %s220
          %226 = dma.hbm_to_vmem [thread:$0]  %s219, 1152, %s221, %s209, 128, 128, 8
        $region32: #{tpu_custom_call.1} parent=27 // pred_fallthru
          _
      $region28: #{tpu_custom_call.1} parent=5 // pred_fallthru
        _
      %p227 = scmp.le.s32.totalorder 1, %s16
      %p228 = scmp.lt.s32.totalorder %s16, 4
      %p229 = pnand %p227, %p228
      %p230 = pneg %p229
      // Predicated region
      $region33: #{tpu_custom_call.1} parent=5 // pred_check
        _
      $region34: #{tpu_custom_call.1} parent=5 // pred_check_branch
        %232 = sbr.rel (%p229) target = $region36
      $region35: #{tpu_custom_call.1} parent=5 // pred_region
        %s233 = ssub.s32 %s16, 1
        // Predicated region
        $region37: #{tpu_custom_call.1} parent=35 // pred_check
          %p234 = pneg %p49
        $region38: #{tpu_custom_call.1} parent=35 // pred_check_branch
          %236 = sbr.rel (%p234) target = $region40
        $region39: #{tpu_custom_call.1} parent=35 // pred_region
          %237 = dma.done [#allocation6], 16
        $region40: #{tpu_custom_call.1} parent=35 // pred_fallthru
          _
        %s238 = sand.u32 %s64, 1
        %s239 = scalar_lea.sflag [#allocation4], %s238
        %s240 = sand.u32 %s64, 1
        %s241 = smul.addr %s240, 72
        %s242 = scalar_lea.vmem [#allocation7], %s241
        // Predicated region
        $region41: #{tpu_custom_call.1} parent=35 // pred_check
          %p243 = pneg %p77
        $region42: #{tpu_custom_call.1} parent=35 // pred_check_branch
          %245 = sbr.rel (%p243) target = $region44
        $region43: #{tpu_custom_call.1} parent=35 // pred_region
          %246 = dma.done %s239, 1152
        $region44: #{tpu_custom_call.1} parent=35 // pred_fallthru
          _
        // Predicated region
        $region45: #{tpu_custom_call.1} parent=35 // pred_check
          %p247 = pneg %p103
        $region46: #{tpu_custom_call.1} parent=35 // pred_check_branch
          %249 = sbr.rel (%p247) target = $region48
        $region47: #{tpu_custom_call.1} parent=35 // pred_region
          %250 = dma.done [#allocation9], 1152
        $region48: #{tpu_custom_call.1} parent=35 // pred_fallthru
          _
        %251 = sfence
        %p252 = pneg %p49
        %p253 = pneg %p46
        %s254 = sand.u32 %s64, 1
        %s255 = scalar_lea.sflag [#allocation4], %s254
        %s256 = sand.u32 %s64, 1
        %s257 = smul.addr %s256, 72
        %s258 = scalar_lea.vmem [#allocation7], %s257
        %p259 = pneg %p77
        %p260 = pneg %p74
        %p261 = pneg %p103
        %p262 = pneg %p100
        %p263 = scmp.lt.s32.totalorder %s25, 0
        %s264 = scalar_select %p263, %s25, 0
        %s265 = smul.addr %s264, 8
        %s266 = scalar_lea.vmem %s3, %s265
        %p267 = pneg %p129
        %p268 = pneg %p126
        %p269 = pneg %p155
        %p270 = pneg %p152
        %p271 = scmp.lt.s32.totalorder %s25, 0
        %s272 = scalar_select %p271, %s25, 0
        %s273 = smul.addr %s272, 8
        %s274 = scalar_lea.vmem %s3, %s273
        %p275 = scmp.eq.s32.totalorder %s26, 0
        // Predicated region
        $region49: #{tpu_custom_call.1} parent=35 // pred_check
          %p276 = pneg %p275
        $region50: #{tpu_custom_call.1} parent=35 // pred_check_branch
          %278 = sbr.rel (%p276) target = $region52
        $region51: #{tpu_custom_call.1} parent=35 // pred_region
          %279 = vst [vmem:[#allocation10] sm:$0xff] 0.0
          %280 = vst [vmem:[#allocation10 + $0x8] sm:$0xff] 0.0
          %281 = vst [vmem:[#allocation10 + $0x10] sm:$0xff] 0.0
          %v282 = vld [vmem:[#allocation8] sm:$0xff]
          %s283 = scalar_lea.vmem [#allocation8], 8
          %v284 = vld [vmem:[%s283] sm:$0xff]
          %s285 = scalar_lea.vmem [#allocation8], 16
          %v286 = vld [vmem:[%s285] sm:$0xff]
          %s287 = scalar_lea.vmem [#allocation8], 24
          %v288 = vld [vmem:[%s287] sm:$0xff]
          %s289 = scalar_lea.vmem [#allocation8], 32
          %v290 = vld [vmem:[%s289] sm:$0xff]
          %s291 = scalar_lea.vmem [#allocation8], 40
          %v292 = vld [vmem:[%s291] sm:$0xff]
          %s293 = scalar_lea.vmem [#allocation8], 48
          %v294 = vld [vmem:[%s293] sm:$0xff]
          %s295 = scalar_lea.vmem [#allocation8], 56
          %v296 = vld [vmem:[%s295] sm:$0xff]
          %s297 = scalar_lea.vmem [#allocation8], 64
          %v298 = vld [vmem:[%s297] sm:$0xff]
          %v299 = vsub.f32 %v288, %v282
          %v300 = vsub.f32 %v290, %v284
          %v301 = vsub.f32 %v292, %v286
          %v302 = vsub.f32 %v294, %v282
          %v303 = vsub.f32 %v296, %v284
          %v304 = vsub.f32 %v298, %v286
          %v305 = vmul.f32 %v299, %v299
          %v306 = vmul.f32 %v300, %v300
          %v307 = vadd.f32 %v305, %v306
          %v308 = vmul.f32 %v301, %v301
          %v309 = vadd.f32 %v307, %v308
          %v310 = vmax.f32 %v309, 1e-24
          %v311 = vrsqrt.pop %v310
          %v312 = vmul.f32 %v302, %v302
          %v313 = vmul.f32 %v303, %v303
          %v314 = vadd.f32 %v312, %v313
          %v315 = vmul.f32 %v304, %v304
          %v316 = vadd.f32 %v314, %v315
          %v317 = vmax.f32 %v316, 1e-24
          %v318 = vrsqrt.pop %v317
          %v319 = vmul.f32 %v299, %v311
          %v320 = vmul.f32 %v300, %v311
          %v321 = vmul.f32 %v301, %v311
          %v322 = vmul.f32 %v302, %v318
          %v323 = vmul.f32 %v303, %v318
          %v324 = vmul.f32 %v304, %v318
          %v325 = vmul.f32 %v320, %v324
          %v326 = vmul.f32 %v321, %v323
          %v327 = vsub.f32 %v325, %v326
          %v328 = vmul.f32 %v321, %v322
          %v329 = vmul.f32 %v319, %v324
          %v330 = vsub.f32 %v328, %v329
          %v331 = vmul.f32 %v319, %v323
          %v332 = vmul.f32 %v320, %v322
          %v333 = vsub.f32 %v331, %v332
          %v334 = vmul.f32 %v327, %v327
          %v335 = vmul.f32 %v330, %v330
          %v336 = vadd.f32 %v334, %v335
          %v337 = vmul.f32 %v333, %v333
          %v338 = vadd.f32 %v336, %v337
          %v339 = vmax.f32 %v338, 1e-24
          %v340 = vrsqrt.pop %v339
          %v341 = vld [vmem:[%s274] sm:$0xff]
          %v342 = vmul.f32 %v340, %v341
          %v343 = vmul.f32 %v327, %v342
          %344 = vst [vmem:[#allocation2] sm:$0xff] %v343
          %v345 = vmul.f32 %v330, %v342
          %s346 = scalar_lea.vmem [#allocation2], 8
          %347 = vst [vmem:[%s346] sm:$0xff] %v345
          %v348 = vmul.f32 %v333, %v342
          %s349 = scalar_lea.vmem [#allocation2], 16
          %350 = vst [vmem:[%s349] sm:$0xff] %v348
        $region52: #{tpu_custom_call.1} parent=35 // pred_fallthru
          _
        %v351 = vld [vmem:[%s242] sm:$0xff]
        %s352 = scalar_lea.vmem %s242, 8 [#allocation7]
        %v353 = vld [vmem:[%s352] sm:$0xff]
        %s354 = scalar_lea.vmem %s242, 16 [#allocation7]
        %v355 = vld [vmem:[%s354] sm:$0xff]
        %s356 = scalar_lea.vmem %s242, 24 [#allocation7]
        %v357 = vld [vmem:[%s356] sm:$0xff]
        %s358 = scalar_lea.vmem %s242, 32 [#allocation7]
        %v359 = vld [vmem:[%s358] sm:$0xff]
        %s360 = scalar_lea.vmem %s242, 40 [#allocation7]
        %v361 = vld [vmem:[%s360] sm:$0xff]
        %s362 = scalar_lea.vmem %s242, 48 [#allocation7]
        %v363 = vld [vmem:[%s362] sm:$0xff]
        %s364 = scalar_lea.vmem %s242, 56 [#allocation7]
        %v365 = vld [vmem:[%s364] sm:$0xff]
        %s366 = scalar_lea.vmem %s242, 64 [#allocation7]
        %v367 = vld [vmem:[%s366] sm:$0xff]
        %v368 = vld [vmem:[#allocation2] sm:$0xff]
        %s369 = scalar_lea.vmem [#allocation2], 8
        %v370 = vld [vmem:[%s369] sm:$0xff]
        %s371 = scalar_lea.vmem [#allocation2], 16
        %v372 = vld [vmem:[%s371] sm:$0xff]
        %s373 = sld [smem:[#allocation3 + %s26]]
        %v374 = vsub.f32 %v357, %v351
        %v375 = vsub.f32 %v359, %v353
        %v376 = vsub.f32 %v361, %v355
        %v377 = vsub.f32 %v363, %v351
        %v378 = vsub.f32 %v365, %v353
        %v379 = vsub.f32 %v367, %v355
        %v380 = vsub.f32 %v363, %v357
        %v381 = vsub.f32 %v365, %v359
        %v382 = vsub.f32 %v367, %v361
        %v383 = vld [vmem:[#allocation10] sm:$0xff]
        %v384 = vmul.f32 %v374, %v368
        %v385 = vmul.f32 %v375, %v370
        %v386 = vadd.f32 %v384, %v385
        %v387 = vmul.f32 %v376, %v372
        %v388 = vadd.f32 %v386, %v387
        %v389 = vand.u32 2147483647, %v388
        %v390 = vmul.f32 %v374, %v374
        %v391 = vmul.f32 %v375, %v375
        %v392 = vadd.f32 %v390, %v391
        %v393 = vmul.f32 %v376, %v376
        %v394 = vadd.f32 %v392, %v393
        %v395 = vmax.f32 %v394, 1e-24
        %v396 = vrsqrt.pop %v395
        %v397 = vmul.f32 %v389, %v396
        %v398 = vstv %s373
        %v399 = vmul.f32 %v397, %v398
        %v400 = vadd.f32 %v383, %v399
        %401 = vst [vmem:[#allocation10] sm:$0xff] %v400
        %s402 = scalar_lea.vmem [#allocation10], 8
        %v403 = vld [vmem:[%s402] sm:$0xff]
        %v404 = vmul.f32 %v377, %v368
        %v405 = vmul.f32 %v378, %v370
        %v406 = vadd.f32 %v404, %v405
        %v407 = vmul.f32 %v379, %v372
        %v408 = vadd.f32 %v406, %v407
        %v409 = vand.u32 2147483647, %v408
        %v410 = vmul.f32 %v377, %v377
        %v411 = vmul.f32 %v378, %v378
        %v412 = vadd.f32 %v410, %v411
        %v413 = vmul.f32 %v379, %v379
        %v414 = vadd.f32 %v412, %v413
        %v415 = vmax.f32 %v414, 1e-24
        %v416 = vrsqrt.pop %v415
        %v417 = vmul.f32 %v409, %v416
        %v418 = vmul.f32 %v417, %v398
        %v419 = vadd.f32 %v403, %v418
        %420 = vst [vmem:[%s402] sm:$0xff] %v419
        %s421 = scalar_lea.vmem [#allocation10], 16
        %v422 = vld [vmem:[%s421] sm:$0xff]
        %v423 = vmul.f32 %v380, %v368
        %v424 = vmul.f32 %v381, %v370
        %v425 = vadd.f32 %v423, %v424
        %v426 = vmul.f32 %v382, %v372
        %v427 = vadd.f32 %v425, %v426
        %v428 = vand.u32 2147483647, %v427
        %v429 = vmul.f32 %v380, %v380
        %v430 = vmul.f32 %v381, %v381
        %v431 = vadd.f32 %v429, %v430
        %v432 = vmul.f32 %v382, %v382
        %v433 = vadd.f32 %v431, %v432
        %v434 = vmax.f32 %v433, 1e-24
        %v435 = vrsqrt.pop %v434
        %v436 = vmul.f32 %v428, %v435
        %v437 = vmul.f32 %v436, %v398
        %v438 = vadd.f32 %v422, %v437
        %439 = vst [vmem:[%s421] sm:$0xff] %v438
        // Predicated region
        $region53: #{tpu_custom_call.1} parent=35 // pred_check
          %p440 = pneg %p152
        $region54: #{tpu_custom_call.1} parent=35 // pred_check_branch
          %442 = sbr.rel (%p440) target = $region56
        $region55: #{tpu_custom_call.1} parent=35 // pred_region
          %s444 = ssub.s32 384, 384
          %445 = vsyncadd [#allocation5], %s444
          %s446 = smul.addr %s25, 128
          %s447 = scalar_lea.hbm %s4, %s446
          %s448 = sshll.u32 [#allocation10], 4
          %s449 = int_to_ptr.vmem [resolvable:$true] %s448
          %454 = dma.vmem_to_hbm [thread:$0]  %s449, 384, %s447, [#allocation5], 128, 128, 8
        $region56: #{tpu_custom_call.1} parent=35 // pred_fallthru
          _
        // Predicated region
        $region57: #{tpu_custom_call.1} parent=35 // pred_check
          %p455 = pneg %p152
        $region58: #{tpu_custom_call.1} parent=35 // pred_check_branch
          %457 = sbr.rel (%p455) target = $region60
        $region59: #{tpu_custom_call.1} parent=35 // pred_region
          %458 = dma.done [#allocation5], 384
        $region60: #{tpu_custom_call.1} parent=35 // pred_fallthru
          _
      $region36: #{tpu_custom_call.1} parent=5 // pred_fallthru
        _
      %p459 = scmp.le.s32.totalorder 2, %s16
      // Predicated region
      $region61: #{tpu_custom_call.1} parent=5 // pred_check
        %p460 = pneg %p459
      $region62: #{tpu_custom_call.1} parent=5 // pred_check_branch
        %462 = sbr.rel (%p460) target = $region64
      $region63: #{tpu_custom_call.1} parent=5 // pred_region
        %s463 = ssub.s32 %s16, 2
      $region64: #{tpu_custom_call.1} parent=5 // pred_fallthru
        _
    $region6: #{tpu_custom_call.1} parent=1 // loop_footer
      %s20 = sadd.s32 1, %s16
    $region7: #{tpu_custom_call.1} parent=1 // loop_footer_branch
      %15 = sbr.rel target = $region3
    $region8: #{tpu_custom_call.1} parent=1 // loop_exit
      _
    %464 = vsyncpa [#allocation4], 1
    %s465 = scalar_lea.sflag [#allocation4], 1
    %466 = vsyncpa %s465, 1
    %467 = vsyncpa [#allocation9], 1
    %468 = vsyncpa [#allocation5], 1
    %s469 = scalar_lea.sflag [#allocation5], 1
    %470 = vsyncpa %s469, 1
    %471 = vsyncpa [#allocation6], 1
    %s472 = scalar_lea.sflag [#allocation6], 1
    %473 = vsyncpa %s472, 1

</llo_original>
